<compile_context>
chip_gen: v6e
topology: v6e:2x2x1
jax: 0.10.0
libtpu: 0.0.40
codegen_flags: <defaults>
</compile_context>

<pallas_src>
import functools

import jax
import jax.numpy as jnp
from jax import lax
from jax.experimental import pallas as pl
from jax.experimental.pallas import tpu as pltpu


def _grid_sample_kernel(plane_ref, coords_ref, out_ref, *, C, H, W, H_pad,
                        align_corners):
    # plane_ref : (C*H_pad, W) f32   (rows with h >= H are zero padding)
    # coords_ref: (2, TN)      f32   row 0 = x (width axis), row 1 = y (height axis), in [-1, 1]
    # out_ref   : (C, TN)      f32
    tn = out_ref.shape[1]
    gx = coords_ref[pl.ds(0, 1), :]          # (1, TN)
    gy = coords_ref[pl.ds(1, 1), :]          # (1, TN)

    if align_corners:
        x = (gx + 1.0) * (0.5 * (W - 1))
        y = (gy + 1.0) * (0.5 * (H - 1))
    else:
        x = ((gx + 1.0) * W - 1.0) * 0.5
        y = ((gy + 1.0) * H - 1.0) * 0.5

    # Bilinear "tent" weights; no floor / int compares needed.
    iota_w = lax.broadcasted_iota(jnp.int32, (W, tn), 0).astype(jnp.float32)
    iota_h = lax.broadcasted_iota(jnp.int32, (H_pad, tn), 0).astype(jnp.float32)
    wx = jnp.maximum(0.0, 1.0 - jnp.abs(iota_w - x))       # (W, TN)
    wy = jnp.maximum(0.0, 1.0 - jnp.abs(iota_h - y))       # (H_pad, TN)

    # Stage 1 (MXU): contract over W.  (C*H_pad, W) @ (W, TN) -> (C*H_pad, TN)
    a = jnp.dot(plane_ref[...], wx, preferred_element_type=jnp.float32)

    # Stage 2 (VPU + sublane reduce over H). H_pad is a multiple of 8, so this
    # reshape is a layout-preserving view (no relayout copy).
    a3 = a.reshape(C, H_pad, tn)
    out_ref[...] = jnp.sum(a3 * wy[None, :, :], axis=1).astype(out_ref.dtype)


def coef_param_forward(params, coordinates, idx_plane, idx_dim,
                       align_corners=True, *, tile_n=512):
    """JAX/Pallas equivalent of CoefParam.forward."""
    plane = params[idx_plane]          # [1, C, H, W]
    assert plane.shape[0] == 1
    _, C, H, W = plane.shape

    grid = coordinates[idx_dim]        # [Npts, 1, 2]  (== coordinates[[idx_dim]][0])
    n_pts = grid.shape[0]
    assert grid.shape[1] == 1 and grid.shape[2] == 2

    # Pad H to a multiple of 8 with zero rows so the in-kernel reshape stays a view.
    # Zero rows contribute nothing (consistent with padding_mode='zeros').
    H_pad = ((H + 7) // 8) * 8
    plane3 = plane[0].astype(jnp.float32)                    # (C, H, W)
    if H_pad != H:
        plane3 = jnp.pad(plane3, ((0, 0), (0, H_pad - H), (0, 0)))
    plane_flat = plane3.reshape(C * H_pad, W)                # (C*H_pad, W)

    coords = grid.reshape(n_pts, 2).T.astype(jnp.float32)    # (2, Npts), row0=x, row1=y

    # Keep coordinate tiles lane-dense (multiple of 128); clamp tile for tiny batches
    # so we don't pay for lots of padded points.
    n_align = ((n_pts + 127) // 128) * 128
    tile_n = min(max(tile_n, 128), max(n_align, 128))
    tile_n = (tile_n // 128) * 128
    n_pad = ((n_pts + tile_n - 1) // tile_n) * tile_n
    # Pad with an out-of-range coordinate (-2) -> all tent weights are exactly zero.
    coords_p = jnp.pad(coords, ((0, 0), (0, n_pad - n_pts)), constant_values=-2.0)

    kernel = functools.partial(
        _grid_sample_kernel, C=C, H=H, W=W, H_pad=H_pad, align_corners=align_corners
    )

    out = pl.pallas_call(
        kernel,
        out_shape=jax.ShapeDtypeStruct((C, n_pad), jnp.float32),
        grid_spec=pltpu.PrefetchScalarGridSpec(
            num_scalar_prefetch=0,
            grid=(n_pad // tile_n,),
            in_specs=[
                # Whole plane resident in VMEM; constant block index so it is only
                # DMA'd once across the coordinate-tile loop.
                pl.BlockSpec((C * H_pad, W), lambda i: (0, 0)),
                pl.BlockSpec((2, tile_n), lambda i: (0, i)),   # coord tile
            ],
            out_specs=pl.BlockSpec((C, tile_n), lambda i: (0, i)),
        ),
        compiler_params=pltpu.CompilerParams(
            dimension_semantics=("parallel",),
            vmem_limit_bytes=64 * 1024 * 1024,
        ),
    )(plane_flat, coords_p)

    out = out[:, :n_pts]                # drop padding
    return out.reshape(1, C, n_pts, 1)  # match PyTorch output [1, C, Npts, 1]


def _ref_grid_sample(plane, grid, align_corners=True):
    """Pure-JAX reference for F.grid_sample (bilinear, zeros padding)."""
    _, C, H, W = plane.shape
    p = plane[0].reshape(C, H * W)
    gx = grid[:, 0, 0]
    gy = grid[:, 0, 1]
    if align_corners:
        x = (gx + 1.0) * 0.5 * (W - 1)
        y = (gy + 1.0) * 0.5 * (H - 1)
    else:
        x = ((gx + 1.0) * W - 1.0) * 0.5
        y = ((gy + 1.0) * H - 1.0) * 0.5
    x0 = jnp.floor(x).astype(jnp.int32)
    y0 = jnp.floor(y).astype(jnp.int32)
    x1, y1 = x0 + 1, y0 + 1
    fx, fy = x - x0, y - y0

    def gather(iy, ix):
        valid = (iy >= 0) & (iy < H) & (ix >= 0) & (ix < W)
        iyc = jnp.clip(iy, 0, H - 1)
        ixc = jnp.clip(ix, 0, W - 1)
        v = p[:, iyc * W + ixc]                      # (C, N)
        return jnp.where(valid[None, :], v, 0.0)

    out = (gather(y0, x0) * ((1 - fy) * (1 - fx))[None, :]
           + gather(y0, x1) * ((1 - fy) * fx)[None, :]
           + gather(y1, x0) * (fy * (1 - fx))[None, :]
           + gather(y1, x1) * (fy * fx)[None, :])
    return out.reshape(1, C, -1, 1)


if __name__ == "__main__":
    key = jax.random.PRNGKey(0)
    k1, k2, k3, k4 = jax.random.split(key, 4)

    # Deterministic "ParameterList": 3 VM plane coefficients (TensoRF-style), NCHW.
    C, H, W = 4, 16, 16
    params = [
        0.1 * jax.random.normal(k1, (1, C, H, W), dtype=jnp.float32),
        0.1 * jax.random.normal(k2, (1, C, H, W), dtype=jnp.float32),
        0.1 * jax.random.normal(k3, (1, C, H, W), dtype=jnp.float32),
    ]

    # coordinates: [3, Npts, 1, 2] in [-1, 1]
    n_pts = 200
    coordinates = jax.random.uniform(
        k4, (3, n_pts, 1, 2), minval=-1.0, maxval=1.0, dtype=jnp.float32
    )
    # Regression points: exact +1 / -1 corners and one out-of-range sample (zeros padding).
    coordinates = coordinates.at[:, 0, 0, :].set(1.0)
    coordinates = coordinates.at[:, 1, 0, :].set(-1.0)
    coordinates = coordinates.at[:, 2, 0, 0].set(1.5)

    idx_plane, idx_dim = 1, 2
    out = coef_param_forward(params, coordinates, idx_plane, idx_dim, align_corners=True)
    out = jax.block_until_ready(out)

    ref = _ref_grid_sample(params[idx_plane], coordinates[idx_dim], align_corners=True)
    assert out.shape == (1, C, n_pts, 1), out.shape
    max_err = float(jnp.max(jnp.abs(out - ref)))
    assert jnp.allclose(out, ref, atol=1e-5, rtol=1e-5), max_err

    print("KERNEL_OK")
</pallas_src>

<mosaic_0001>
module attributes {stable_mosaic.version = 11 : i64} {
  func.func @_grid_sample_kernel(%arg0: i32, %arg1: memref<64x16xf32, #tpu.memory_space<vmem>>, %arg2: memref<2x256xf32, #tpu.memory_space<vmem>>, %arg3: memref<4x256xf32, #tpu.memory_space<vmem>>) attributes {dimension_semantics = [#tpu.dimension_semantics<parallel>], iteration_bounds = array<i64: 1>, scalar_prefetch = 0 : i64, scratch_operands = 0 : i64, tpu.core_type = #tpu.core_type<tc>, window_params = [{pipeline_mode = #tpu.pipeline_mode<synchronous>, transform_indices = @transform_0, window_bounds = array<i64: 64, 16>}, {transform_indices = @transform_1, window_bounds = array<i64: 2, 256>}, {transform_indices = @transform_2, window_bounds = array<i64: 4, 256>}]} {
    %c0 = arith.constant 0 : index
    %c0_0 = arith.constant 0 : index
    %0 = vector.load %arg2[%c0, %c0_0] : memref<2x256xf32, #tpu.memory_space<vmem>>, vector<1x256xf32>
    %c1 = arith.constant 1 : index
    %c0_1 = arith.constant 0 : index
    %1 = vector.load %arg2[%c1, %c0_1] : memref<2x256xf32, #tpu.memory_space<vmem>>, vector<1x256xf32>
    %cst = arith.constant 1.000000e+00 : f32
    %2 = vector.broadcast %cst : f32 to vector<1x256xf32>
    %3 = arith.addf %0, %2 : vector<1x256xf32>
    %cst_2 = arith.constant 7.500000e+00 : f32
    %4 = vector.broadcast %cst_2 : f32 to vector<1x256xf32>
    %5 = arith.mulf %3, %4 : vector<1x256xf32>
    %cst_3 = arith.constant 1.000000e+00 : f32
    %6 = vector.broadcast %cst_3 : f32 to vector<1x256xf32>
    %7 = arith.addf %1, %6 : vector<1x256xf32>
    %cst_4 = arith.constant 7.500000e+00 : f32
    %8 = vector.broadcast %cst_4 : f32 to vector<1x256xf32>
    %9 = arith.mulf %7, %8 : vector<1x256xf32>
    %10 = tpu.iota {dimensions = array<i32: 0>} : vector<16x256xi32>
    %11 = arith.sitofp %10 : vector<16x256xi32> to vector<16x256xf32>
    %12 = tpu.iota {dimensions = array<i32: 0>} : vector<16x256xi32>
    %13 = arith.sitofp %12 : vector<16x256xi32> to vector<16x256xf32>
    %14 = vector.broadcast %5 : vector<1x256xf32> to vector<16x256xf32>
    %15 = arith.subf %11, %14 : vector<16x256xf32>
    %16 = math.absf %15 : vector<16x256xf32>
    %cst_5 = arith.constant 1.000000e+00 : f32
    %17 = vector.broadcast %cst_5 : f32 to vector<16x256xf32>
    %18 = arith.subf %17, %16 : vector<16x256xf32>
    %cst_6 = arith.constant 0.000000e+00 : f32
    %19 = vector.broadcast %cst_6 : f32 to vector<16x256xf32>
    %20 = arith.maximumf %19, %18 : vector<16x256xf32>
    %21 = vector.broadcast %9 : vector<1x256xf32> to vector<16x256xf32>
    %22 = arith.subf %13, %21 : vector<16x256xf32>
    %23 = math.absf %22 : vector<16x256xf32>
    %cst_7 = arith.constant 1.000000e+00 : f32
    %24 = vector.broadcast %cst_7 : f32 to vector<16x256xf32>
    %25 = arith.subf %24, %23 : vector<16x256xf32>
    %cst_8 = arith.constant 0.000000e+00 : f32
    %26 = vector.broadcast %cst_8 : f32 to vector<16x256xf32>
    %27 = arith.maximumf %26, %25 : vector<16x256xf32>
    %c0_9 = arith.constant 0 : index
    %c0_10 = arith.constant 0 : index
    %28 = vector.load %arg1[%c0_9, %c0_10] : memref<64x16xf32, #tpu.memory_space<vmem>>, vector<64x16xf32>
    %cst_11 = arith.constant dense<0.000000e+00> : vector<64x256xf32>
    %29 = tpu.matmul %28, %20, %cst_11 {dimension_numbers = #tpu.dot_dimension_numbers<[1], [0], [0], [1], [0, 0, 1, 1], [], []>} : vector<64x16xf32>, vector<16x256xf32>, vector<64x256xf32> -> vector<64x256xf32>
    %30 = vector.shape_cast %29 : vector<64x256xf32> to vector<4x16x256xf32>
    %31 = vector.shape_cast %27 : vector<16x256xf32> to vector<1x16x256xf32>
    %32 = vector.broadcast %31 : vector<1x16x256xf32> to vector<4x16x256xf32>
    %33 = arith.mulf %30, %32 : vector<4x16x256xf32>
    %cst_12 = arith.constant dense<0.000000e+00> : vector<4x256xf32>
    %34 = vector.multi_reduction <add>, %33, %cst_12 [1] : vector<4x16x256xf32> to vector<4x256xf32>
    %c0_13 = arith.constant 0 : index
    %c0_14 = arith.constant 0 : index
    %35 = vector.load %arg3[%c0_13, %c0_14] : memref<4x256xf32, #tpu.memory_space<vmem>>, vector<4x256xf32>
    tpu.vector_store %arg3[%c0_13, %c0_14], %34 {strides = array<i32>} : memref<4x256xf32, #tpu.memory_space<vmem>>, vector<4x256xf32>,
    return
  }
  func.func @transform_0(%arg0: i32) -> (i32, i32) {
    %c0_i32 = arith.constant 0 : i32
    %c0_i32_0 = arith.constant 0 : i32
    %c0_i32_1 = arith.constant 0 : i32
    return %c0_i32, %c0_i32_0 : i32, i32
  }
  func.func @transform_1(%arg0: i32) -> (i32, i32) {
    %c0_i32 = arith.constant 0 : i32
    %c0_i32_0 = arith.constant 0 : i32
    return %c0_i32, %arg0 : i32, i32
  }
  func.func @transform_2(%arg0: i32) -> (i32, i32) {
    %c0_i32 = arith.constant 0 : i32
    %c0_i32_0 = arith.constant 0 : i32
    return %c0_i32, %arg0 : i32, i32
  }
}

</mosaic_0001>

<llo_original>
// kernel: tpu_custom_call.1
$region0: #{tpu_custom_call.1}
  #allocation0 [shape = 'u32[]', space=smem, size = 0x4, offset = 0x4, fixed_abs, tag = 'smem constant byte address 0x4 - core index']
  #allocation1 [shape = 'u32[144,128]{1,0:T(1,128)}', space=vmem, size = 0x12000, scoped, tag = 'internal scratch']
  %s0 = inlined_call_operand.vmem [shape: f32[64,16], index: 0, kind: input, shape index: {}]
  %s1 = inlined_call_operand.vmem [shape: f32[2,256], index: 1, kind: input, shape index: {}]
  %s2 = inlined_call_operand.hbm [shape: f32[4,256], index: 2, kind: output, shape index: {}]
  %s3 = sld [smem:[#allocation0]]
  $region18: #{tpu_custom_call.1} parent=0
    _
  %s5 = ssub.s32 1, %s3
  %s6 = scalar_select 0, %s5, %s3
  $region1: #{tpu_custom_call.1} parent=0
    #allocation2 [shape = 'u8[4096]{0}', space=vmem, size = 0x1000, scoped, tag = 'output window, operand 0, single buffered']
    #allocation3 [shape = 's32[1]{0}', space=sflag, size = 0x4, scoped, tag = 'scoped memory for tpu_custom_call.1']
    %7 = vsyncpa [#allocation3], 0
    // Predicated region
    $region2: #{tpu_custom_call.1} parent=1 // pred_check
      _
    $region3: #{tpu_custom_call.1} parent=1 // pred_check_branch
      %9 = sbr.rel (0) target = $region5
    $region4: #{tpu_custom_call.1} parent=1 // pred_region
      _
    $region5: #{tpu_custom_call.1} parent=1 // pred_fallthru
      _
    // Predicated region
    $region6: #{tpu_custom_call.1} parent=1 // pred_check
      _
    $region7: #{tpu_custom_call.1} parent=1 // pred_check_branch
      %11 = sbr.rel (0) target = $region9
    $region8: #{tpu_custom_call.1} parent=1 // pred_region
      _
    $region9: #{tpu_custom_call.1} parent=1 // pred_fallthru
      _
    %v12 = vld [vmem:[%s1] ss:$2 sm:$0x3]
    %s13 = scalar_lea.vmem %s1, 1
    %v14 = vld [vmem:[%s13] ss:$2 sm:$0x3]
    %v15 = vadd.f32 %v12, 1.0
    %v16 = vmul.f32 %v15, 7.5
    %v17 = vadd.f32 %v14, 1.0
    %v18 = vmul.f32 %v17, 7.5
    %v19 = vlaneseq
    %v20 = vshrl.u32 %v19, 7
    %v21 = vadd.s32 %v20, 8
    %v22 = vcvt.s32.f32 %v20
    %v23 = vcvt.s32.f32 %v21
    %v25 = vlaneseq
    %v26 = vshrl.u32 %v25, 7
    %v27 = vsub.s32 0, %v26
    %v28 = vrot.slane %v16, %v27
    %v29 = vlaneseq
    %v30 = vshrl.u32 %v29, 7
    %v31 = vsub.s32 1, %v30
    %v32 = vrot.slane %v16, %v31
    %v35 = vsub.f32 %v22, %v28
    %v36 = vsub.f32 %v22, %v32
    %v37 = vsub.f32 %v23, %v28
    %v38 = vsub.f32 %v23, %v32
    %v39 = vand.u32 2147483647, %v35
    %v40 = vand.u32 2147483647, %v36
    %v41 = vand.u32 2147483647, %v37
    %v42 = vand.u32 2147483647, %v38
    %v43 = vsub.f32 1.0, %v39
    %v44 = vsub.f32 1.0, %v40
    %v45 = vsub.f32 1.0, %v41
    %v46 = vsub.f32 1.0, %v42
    %v47 = vmax.f32 %v43, 0.0
    %v48 = vmax.f32 %v44, 0.0
    %v49 = vmax.f32 %v45, 0.0
    %v50 = vmax.f32 %v46, 0.0
    %v52 = vlaneseq
    %v53 = vshrl.u32 %v52, 7
    %v54 = vsub.s32 0, %v53
    %v55 = vrot.slane %v18, %v54
    %v56 = vlaneseq
    %v57 = vshrl.u32 %v56, 7
    %v58 = vsub.s32 1, %v57
    %v59 = vrot.slane %v18, %v58
    %v62 = vsub.f32 %v22, %v55
    %v63 = vsub.f32 %v22, %v59
    %v64 = vsub.f32 %v23, %v55
    %v65 = vsub.f32 %v23, %v59
    %v66 = vand.u32 2147483647, %v62
    %v67 = vand.u32 2147483647, %v63
    %v68 = vand.u32 2147483647, %v64
    %v69 = vand.u32 2147483647, %v65
    %v70 = vsub.f32 1.0, %v66
    %v71 = vsub.f32 1.0, %v67
    %v72 = vsub.f32 1.0, %v68
    %v73 = vsub.f32 1.0, %v69
    %v74 = vmax.f32 %v70, 0.0
    %v75 = vmax.f32 %v71, 0.0
    %v76 = vmax.f32 %v72, 0.0
    %v77 = vmax.f32 %v73, 0.0
    %v78 = vld [vmem:[%s0] sm:$0xff]
    %v79 = vld [vmem:[%s0 + $0x8] sm:$0xff]
    %v80 = vld [vmem:[%s0 + $0x10] sm:$0xff]
    %v81 = vld [vmem:[%s0 + $0x18] sm:$0xff]
    %v82 = vld [vmem:[%s0 + $0x20] sm:$0xff]
    %v83 = vld [vmem:[%s0 + $0x28] sm:$0xff]
    %v84 = vld [vmem:[%s0 + $0x30] sm:$0xff]
    %v85 = vld [vmem:[%s0 + $0x38] sm:$0xff]
    %vm86 = vcmask 130048
    %v88 = vsel %vm86, %v78, 0
    %v91 = vsel %vm86, %v79, 0
    %v94 = vsel %vm86, %v80, 0
    %v97 = vsel %vm86, %v81, 0
    %v100 = vsel %vm86, %v82, 0
    %v103 = vsel %vm86, %v83, 0
    %v106 = vsel %vm86, %v84, 0
    %v109 = vsel %vm86, %v85, 0
    %111 = vmatprep.subr.mxu0 0.0
    %112 = vmatpush1.msra.mxu0 0.0
    %113 = vmatprep.subr.mxu0 0.0
    %114 = vmatpush1.msra.mxu0 0.0
    %115 = vmatprep.subr.mxu0 0.0
    %116 = vmatpush1.msra.mxu0 0.0
    %117 = vmatprep.subr.mxu0 0.0
    %118 = vmatpush1.msra.mxu0 0.0
    %119 = vmatprep.subr.mxu0 0.0
    %120 = vmatpush1.msra.mxu0 0.0
    %121 = vmatprep.subr.mxu0 0.0
    %122 = vmatpush1.msra.mxu0 0.0
    %123 = vmatprep.subr.mxu0 0.0
    %124 = vmatpush1.msra.mxu0 0.0
    %125 = vmatprep.subr.mxu0 0.0
    %126 = vmatpush1.msra.mxu0 0.0
    %127 = vmatprep.subr.mxu0 0.0
    %128 = vmatpush1.msra.mxu0 0.0
    %129 = vmatprep.subr.mxu0 0.0
    %130 = vmatpush1.msra.mxu0 0.0
    %131 = vmatprep.subr.mxu0 0.0
    %132 = vmatpush1.msra.mxu0 0.0
    %133 = vmatprep.subr.mxu0 0.0
    %134 = vmatpush1.msra.mxu0 0.0
    %135 = vmatprep.subr.mxu0 0.0
    %136 = vmatpush1.msra.mxu0 0.0
    %137 = vmatprep.subr.mxu0 0.0
    %138 = vmatpush1.msra.mxu0 0.0
    %139 = vmatprep.subr.mxu0 %v50
    %140 = vmatpush1.msra.mxu0 %v49
    %141 = vmatprep.subr.mxu0 %v48
    %142 = vmatpush1.msra.mxu0 %v47
    %143 = vmatprep.subr.mxu0 0.0
    %144 = vmatpush2.msra.mxu0 0.0
    %145 = vmatprep.subr.mxu0 0.0
    %146 = vmatpush2.msra.mxu0 0.0
    %147 = vmatprep.subr.mxu0 0.0
    %148 = vmatpush2.msra.mxu0 0.0
    %149 = vmatprep.subr.mxu0 0.0
    %150 = vmatpush2.msra.mxu0 0.0
    %151 = vmatprep.subr.mxu0 0.0
    %152 = vmatpush2.msra.mxu0 0.0
    %153 = vmatprep.subr.mxu0 0.0
    %154 = vmatpush2.msra.mxu0 0.0
    %155 = vmatprep.subr.mxu0 0.0
    %156 = vmatpush2.msra.mxu0 0.0
    %157 = vmatprep.subr.mxu0 0.0
    %158 = vmatpush2.msra.mxu0 0.0
    %159 = vmatprep.subr.mxu0 0.0
    %160 = vmatpush2.msra.mxu0 0.0
    %161 = vmatprep.subr.mxu0 0.0
    %162 = vmatpush2.msra.mxu0 0.0
    %163 = vmatprep.subr.mxu0 0.0
    %164 = vmatpush2.msra.mxu0 0.0
    %165 = vmatprep.subr.mxu0 0.0
    %166 = vmatpush2.msra.mxu0 0.0
    %167 = vmatprep.subr.mxu0 0.0
    %168 = vmatpush2.msra.mxu0 0.0
    %169 = vmatprep.subr.mxu0 0.0
    %170 = vmatpush2.msra.mxu0 0.0
    %171 = vmatprep.subr.mxu0 0.0
    %172 = vmatpush2.msra.mxu0 0.0
    %173 = vmatprep.subr.mxu0 0.0
    %174 = vmatpush2.msra.mxu0 0.0
    %175 = vmatprep.mubr.f32.mxu0 0.0
    %176 = vmatmul.mubr.f32.gmra.mxu0 %v88
    %v177 = vpop.f32.mrf.mxu0
    %v178 = vadd.f32 0.0, %v177
    %v179 = vpop.f32.mrf.mxu0
    %v180 = vadd.f32 0.0, %v179
    %181 = vmatprep.mubr.f32.mxu0 0.0
    %182 = vmatmul.mubr.f32.gmra.mxu0 %v91
    %v183 = vpop.f32.mrf.mxu0
    %v184 = vadd.f32 0.0, %v183
    %v185 = vpop.f32.mrf.mxu0
    %v186 = vadd.f32 0.0, %v185
    %187 = vmatprep.mubr.f32.mxu0 0.0
    %188 = vmatmul.mubr.f32.gmra.mxu0 %v94
    %v189 = vpop.f32.mrf.mxu0
    %v190 = vadd.f32 0.0, %v189
    %v191 = vpop.f32.mrf.mxu0
    %v192 = vadd.f32 0.0, %v191
    %193 = vmatprep.mubr.f32.mxu0 0.0
    %194 = vmatmul.mubr.f32.gmra.mxu0 %v97
    %v195 = vpop.f32.mrf.mxu0
    %v196 = vadd.f32 0.0, %v195
    %v197 = vpop.f32.mrf.mxu0
    %v198 = vadd.f32 0.0, %v197
    %199 = vmatprep.mubr.f32.mxu0 0.0
    %200 = vmatmul.mubr.f32.gmra.mxu0 %v100
    %v201 = vpop.f32.mrf.mxu0
    %v202 = vadd.f32 0.0, %v201
    %v203 = vpop.f32.mrf.mxu0
    %v204 = vadd.f32 0.0, %v203
    %205 = vmatprep.mubr.f32.mxu0 0.0
    %206 = vmatmul.mubr.f32.gmra.mxu0 %v103
    %v207 = vpop.f32.mrf.mxu0
    %v208 = vadd.f32 0.0, %v207
    %v209 = vpop.f32.mrf.mxu0
    %v210 = vadd.f32 0.0, %v209
    %211 = vmatprep.mubr.f32.mxu0 0.0
    %212 = vmatmul.mubr.f32.gmra.mxu0 %v106
    %v213 = vpop.f32.mrf.mxu0
    %v214 = vadd.f32 0.0, %v213
    %v215 = vpop.f32.mrf.mxu0
    %v216 = vadd.f32 0.0, %v215
    %217 = vmatprep.mubr.f32.mxu0 0.0
    %218 = vmatmul.mubr.f32.gmra.mxu0 %v109
    %v219 = vpop.f32.mrf.mxu0
    %v220 = vadd.f32 0.0, %v219
    %v221 = vpop.f32.mrf.mxu0
    %v222 = vadd.f32 0.0, %v221
    %223 = vdwg.mxu0
    %v224 = vmul.f32 %v178, %v74
    %v225 = vmul.f32 %v180, %v75
    %v226 = vmul.f32 %v184, %v76
    %v227 = vmul.f32 %v186, %v77
    %v228 = vmul.f32 %v190, %v74
    %v229 = vmul.f32 %v192, %v75
    %v230 = vmul.f32 %v196, %v76
    %v231 = vmul.f32 %v198, %v77
    %v232 = vmul.f32 %v202, %v74
    %v233 = vmul.f32 %v204, %v75
    %v234 = vmul.f32 %v208, %v76
    %v235 = vmul.f32 %v210, %v77
    %v236 = vmul.f32 %v214, %v74
    %v237 = vmul.f32 %v216, %v75
    %v238 = vmul.f32 %v220, %v76
    %v239 = vmul.f32 %v222, %v77
    %v240 = vadd.f32 %v224, %v226
    %v241 = vrot.slane %v240, 4
    %v242 = vadd.f32 %v240, %v241
    %v243 = vrot.slane %v242, 2
    %v244 = vadd.f32 %v242, %v243
    %v245 = vrot.slane %v244, 1
    %v246 = vadd.f32 %v244, %v245
    %v247 = vadd.f32 %v225, %v227
    %v248 = vrot.slane %v247, 4
    %v249 = vadd.f32 %v247, %v248
    %v250 = vrot.slane %v249, 2
    %v251 = vadd.f32 %v249, %v250
    %v252 = vrot.slane %v251, 1
    %v253 = vadd.f32 %v251, %v252
    %v254 = vadd.f32 %v228, %v230
    %v255 = vrot.slane %v254, 4
    %v256 = vadd.f32 %v254, %v255
    %v257 = vrot.slane %v256, 2
    %v258 = vadd.f32 %v256, %v257
    %v259 = vrot.slane %v258, 1
    %v260 = vadd.f32 %v258, %v259
    %v261 = vadd.f32 %v229, %v231
    %v262 = vrot.slane %v261, 4
    %v263 = vadd.f32 %v261, %v262
    %v264 = vrot.slane %v263, 2
    %v265 = vadd.f32 %v263, %v264
    %v266 = vrot.slane %v265, 1
    %v267 = vadd.f32 %v265, %v266
    %v268 = vadd.f32 %v232, %v234
    %v269 = vrot.slane %v268, 4
    %v270 = vadd.f32 %v268, %v269
    %v271 = vrot.slane %v270, 2
    %v272 = vadd.f32 %v270, %v271
    %v273 = vrot.slane %v272, 1
    %v274 = vadd.f32 %v272, %v273
    %v275 = vadd.f32 %v233, %v235
    %v276 = vrot.slane %v275, 4
    %v277 = vadd.f32 %v275, %v276
    %v278 = vrot.slane %v277, 2
    %v279 = vadd.f32 %v277, %v278
    %v280 = vrot.slane %v279, 1
    %v281 = vadd.f32 %v279, %v280
    %v282 = vadd.f32 %v236, %v238
    %v283 = vrot.slane %v282, 4
    %v284 = vadd.f32 %v282, %v283
    %v285 = vrot.slane %v284, 2
    %v286 = vadd.f32 %v284, %v285
    %v287 = vrot.slane %v286, 1
    %v288 = vadd.f32 %v286, %v287
    %v289 = vadd.f32 %v237, %v239
    %v290 = vrot.slane %v289, 4
    %v291 = vadd.f32 %v289, %v290
    %v292 = vrot.slane %v291, 2
    %v293 = vadd.f32 %v291, %v292
    %v294 = vrot.slane %v293, 1
    %v295 = vadd.f32 %v293, %v294
    %v304 = vcombine.low %v246, %v253
    %v305 = vcombine.low %v260, %v267
    %v306 = vcombine.low %v274, %v281
    %v307 = vcombine.low %v288, %v295
    %v308 = vrot.slane %v305, 7
    %vm309 = vcmask 1041409
    %v310 = vsel %vm309, %v308, %v304
    %vm311 = vcmask 1045509
    %v312 = vsel %vm311, %v308, %v310
    %v313 = vrot.slane %v306, 6
    %vm314 = vcmask 1042434
    %v315 = vsel %vm314, %v313, %v312
    %vm316 = vcmask 1046534
    %v317 = vsel %vm316, %v313, %v315
    %v318 = vrot.slane %v307, 5
    %vm319 = vcmask 1043459
    %v320 = vsel %vm319, %v318, %v317
    %vm321 = vcmask 1047559
    %v322 = vsel %vm321, %v318, %v320
    %324 = vst [vmem:[#allocation2] sm:$0xff] %v322
    // Predicated region
    $region10: #{tpu_custom_call.1} parent=1 // pred_check
      _
    $region11: #{tpu_custom_call.1} parent=1 // pred_check_branch
      %326 = sbr.rel (0) target = $region13
    $region12: #{tpu_custom_call.1} parent=1 // pred_region
      %s328 = ssub.s32 128, 128
      %329 = vsyncadd [#allocation3], %s328
      %s331 = sshll.u32 [#allocation2], 4
      %s332 = int_to_ptr.vmem [resolvable:$true] %s331
      %334 = dma.vmem_to_hbm [thread:$0]  %s332, 128, %s2, [#allocation3]
    $region13: #{tpu_custom_call.1} parent=1 // pred_fallthru
      _
    // Predicated region
    $region14: #{tpu_custom_call.1} parent=1 // pred_check
      _
    $region15: #{tpu_custom_call.1} parent=1 // pred_check_branch
      %336 = sbr.rel (0) target = $region17
    $region16: #{tpu_custom_call.1} parent=1 // pred_region
      %337 = dma.done [#allocation3], 128
    $region17: #{tpu_custom_call.1} parent=1 // pred_fallthru
      _
    %338 = vsyncpa [#allocation3], 1

</llo_original>
